<compile_context>
chip_gen: v5e
topology: v5e:2x2
jax: 0.10.0
libtpu: 0.0.40
codegen_flags: <defaults>
</compile_context>

<pallas_src>
import numpy as np

import jax
import jax.numpy as jnp
from jax.experimental import pallas as pl
from jax.experimental.pallas import tpu as pltpu


def _pair(v):
    return (v, v) if isinstance(v, int) else tuple(v)


def _folded_matmul_kernel(inp_ref, g_ref, b_ref, out_ref):
    """One grid step = one M-tile of the batch.

    inp_ref : [tm, K]  assembled frame (cache rows + new frame), flattened (Cin,T,F)
    g_ref   : [K, N]   folded (zero-stuff + pad + conv) weights, bf16
    b_ref   : [1, N]   bias broadcast over F_out (N = Cout*F_out, lane-dense), f32
    out_ref : [tm, N]
    """
    acc = jnp.dot(inp_ref[...].astype(jnp.bfloat16), g_ref[...],
                  preferred_element_type=jnp.float32)
    out_ref[...] = (acc + b_ref[...]).astype(out_ref.dtype)


def init_stream_conv_transpose2d(weight, bias, *, F, kernel_size, stride=1,
                                 padding=0, dilation=1):
    """Precompute (once, at init — hoisted out of the per-frame path) the folded
    conv->matmul operands and return a jitted per-frame apply(x, cache) function.

    weight: [Cout, Cin, T_size, F_size] (nn.Conv2d layout, groups=1), bias: [Cout].
    """
    T_size, F_size = _pair(kernel_size)
    T_stride, F_stride = _pair(stride)
    T_pad, F_pad = _pair(padding)
    T_dil, F_dil = _pair(dilation)
    assert T_stride == 1 and T_pad == 0

    Cout, Cin = weight.shape[0], weight.shape[1]
    Tc = (T_size - 1) * T_dil              # cache rows so that T_out == 1
    assert Tc >= 1, "streaming kernel assumes T_size >= 2 (non-empty cache)"
    T = Tc + 1

    if F_stride > 1:
        left_pad = F_stride - 1
        # mirrors the NotImplementedError branches of the reference module
        assert F_size > 1 and left_pad <= F_size - 1
        pad_l = (F_size - 1) * F_dil - F_pad
        pad_r = pad_l - left_pad
        L = F * F_stride + pad_l + pad_r
    else:
        pad_l = pad_r = (F_size - 1) * F_dil - F_pad
        L = F + pad_l + pad_r
    F_out = L - (F_size - 1) * F_dil
    assert F_out >= 1, "invalid padding/kernel configuration (no output columns)"

    # ---- host-side weight folding:
    #   out[b,co,o] = bias[co] + sum_{ci,t,j} inp[b,ci,t,j] * G[ci,t,j,co,o]
    # Zero-stuffing and (possibly negative) padding are folded into the index map
    # o = pad_l + j*F_stride - kf*F_dil, so no stuffed/padded buffer ever exists.
    w_np = np.asarray(weight, np.float32)            # [Cout, Cin, T_size, F_size]
    b_np = np.asarray(bias, np.float32)              # [Cout]
    G = np.zeros((Cin, T, F, Cout, F_out), np.float32)
    for kt in range(T_size):
        t = kt * T_dil
        for kf in range(F_size):
            for j in range(F):
                o = pad_l + j * F_stride - kf * F_dil
                if 0 <= o < F_out:
                    G[:, t, j, :, o] += w_np[:, :, kt, kf].T
    K = Cin * T * F
    N = Cout * F_out
    # bf16 weights (halves resident VMEM + HBM->VMEM bytes; full-rate bf16 MXU), f32 bias.
    G_flat = jnp.asarray(G.reshape(K, N), dtype=jnp.bfloat16)
    b_n = jnp.asarray(np.repeat(b_np, F_out).reshape(1, N), dtype=jnp.float32)

    TM_MAX = 256   # M-tile for large batches (fills MXU rows on v6e/v7x, fine on v5e)

    @jax.jit
    def apply(x, cache):
        bs = x.shape[0]
        assert x.shape == (bs, Cin, 1, F)
        assert cache.shape == (bs, Cin, Tc, F)

        # Assemble the full frame once; it serves both the matmul input and the cache
        # update (out_cache = inp[:, :, 1:] == concat([cache[:,:,1:], x], axis=2)).
        inp = jnp.concatenate([cache, x], axis=2)          # [bs, Cin, T, F]
        out_cache = inp[:, :, 1:]
        flat = inp.reshape(bs, K)                          # contiguous (Cin,T,F) flatten

        tm = bs if bs <= TM_MAX else TM_MAX
        grid_m = pl.cdiv(bs, tm)

        flops = 2 * bs * K * N
        bytes_accessed = bs * K * 4 + K * N * 2 + N * 4 + bs * N * 4
        # Double-buffered per-step footprint: activations(f32) + weights(bf16) + bias + out.
        vmem_needed = 2 * (tm * K * 4 + K * N * 2 + N * 4 + tm * N * 4)
        cp_kwargs = dict(dimension_semantics=("parallel",))
        if vmem_needed > (16 << 20):            # v5e default scoped VMEM limit
            # headroom, but stay well inside v7x's 64 MiB physical VMEM
            cp_kwargs["vmem_limit_bytes"] = min(int(1.25 * vmem_needed), 48 << 20)

        out = pl.pallas_call(
            _folded_matmul_kernel,
            out_shape=jax.ShapeDtypeStruct((bs, N), x.dtype),
            grid=(grid_m,),
            in_specs=[
                pl.BlockSpec((tm, K), lambda i: (i, 0)),
                pl.BlockSpec((K, N), lambda i: (0, 0)),    # weights resident across M-tiles
                pl.BlockSpec((1, N), lambda i: (0, 0)),
            ],
            out_specs=pl.BlockSpec((tm, N), lambda i: (i, 0)),
            compiler_params=pltpu.CompilerParams(**cp_kwargs),
            cost_estimate=pl.CostEstimate(
                flops=flops, transcendentals=0, bytes_accessed=bytes_accessed),
        )(flat, G_flat, b_n)

        outp = out.reshape(bs, Cout, 1, F_out)             # contiguous reshape: free
        return outp, out_cache

    return apply


def _reference(x, cache, weight, bias, *, kernel_size, stride, padding=0, dilation=1):
    """Literal (stuff + pad + conv) reference mirroring the torch code path."""
    T_size, F_size = _pair(kernel_size)
    _, F_stride = _pair(stride)
    _, F_pad = _pair(padding)
    T_dil, F_dil = _pair(dilation)

    inp = jnp.concatenate([cache, x], axis=2)
    out_cache = inp[:, :, 1:]
    bs, C, T, F = inp.shape
    if F_stride > 1:
        zeros = jnp.zeros((bs, C, T, F, F_stride - 1), inp.dtype)
        inp = jnp.concatenate([inp[..., None], zeros], axis=-1).reshape(bs, C, T, -1)
        left_pad = F_stride - 1
        pad_l = (F_size - 1) * F_dil - F_pad
        pad_r = pad_l - left_pad
    else:
        pad_l = pad_r = (F_size - 1) * F_dil - F_pad
    assert pad_l >= 0 and pad_r >= 0, "jnp.pad cannot crop (negative pad) in the reference"
    inp = jnp.pad(inp, ((0, 0), (0, 0), (0, 0), (pad_l, pad_r)))
    out = jax.lax.conv_general_dilated(
        inp, weight, window_strides=(1, 1), padding='VALID',
        rhs_dilation=(T_dil, F_dil),
        dimension_numbers=('NCHW', 'OIHW', 'NCHW'),
        precision=jax.lax.Precision.HIGHEST)
    out = out + bias[None, :, None, None]
    return out, out_cache


if __name__ == "__main__":
    # Small, deterministic config consistent with the module.
    bs, Cin, Cout, F = 2, 4, 8, 16
    kernel_size = (3, 3)     # (T_size, F_size)
    stride = (1, 2)          # T_stride must be 1; F_stride=2 exercises the upsample path
    padding = 0
    dilation = 1
    T_size = kernel_size[0]

    key = jax.random.PRNGKey(0)
    kx, kc, kw, kb = jax.random.split(key, 4)
    x = jax.random.normal(kx, (bs, Cin, 1, F), jnp.float32)
    cache = jax.random.normal(kc, (bs, Cin, T_size - 1, F), jnp.float32)
    weight = 0.1 * jax.random.normal(kw, (Cout, Cin, kernel_size[0], kernel_size[1]), jnp.float32)
    bias = 0.1 * jax.random.normal(kb, (Cout,), jnp.float32)

    apply = init_stream_conv_transpose2d(
        weight, bias, F=F, kernel_size=kernel_size, stride=stride,
        padding=padding, dilation=dilation)

    outp, out_cache = apply(x, cache)
    jax.block_until_ready((outp, out_cache))

    ref_out, ref_cache = _reference(
        x, cache, weight, bias,
        kernel_size=kernel_size, stride=stride, padding=padding, dilation=dilation)

    # bf16 MXU products with f32 accumulation (same error level as default-precision f32
    # dot); reference kept at HIGHEST precision, tolerance relaxed accordingly.
    np.testing.assert_allclose(np.asarray(outp), np.asarray(ref_out), rtol=2e-2, atol=2e-2)
    np.testing.assert_allclose(np.asarray(out_cache), np.asarray(ref_cache), rtol=0, atol=0)
    print("KERNEL_OK")
</pallas_src>

<mosaic_0001>
module attributes {stable_mosaic.version = 11 : i64} {
  func.func @_folded_matmul_kernel(%arg0: i32, %arg1: memref<2x192xf32, #tpu.memory_space<vmem>>, %arg2: memref<192x264xbf16, #tpu.memory_space<vmem>>, %arg3: memref<1x264xf32, #tpu.memory_space<vmem>>, %arg4: memref<2x264xf32, #tpu.memory_space<vmem>>) attributes {dimension_semantics = [#tpu.dimension_semantics<parallel>], iteration_bounds = array<i64: 1>, scalar_prefetch = 0 : i64, scratch_operands = 0 : i64, tpu.core_type = #tpu.core_type<tc>, window_params = [{transform_indices = @transform_0, window_bounds = array<i64: 2, 192>}, {pipeline_mode = #tpu.pipeline_mode<synchronous>, transform_indices = @transform_1, window_bounds = array<i64: 192, 264>}, {pipeline_mode = #tpu.pipeline_mode<synchronous>, transform_indices = @transform_2, window_bounds = array<i64: 1, 264>}, {transform_indices = @transform_3, window_bounds = array<i64: 2, 264>}]} {
    %c0 = arith.constant 0 : index
    %c0_0 = arith.constant 0 : index
    %0 = vector.load %arg1[%c0, %c0_0] : memref<2x192xf32, #tpu.memory_space<vmem>>, vector<2x192xf32>
    %1 = arith.truncf %0 : vector<2x192xf32> to vector<2x192xbf16>
    %c0_1 = arith.constant 0 : index
    %c0_2 = arith.constant 0 : index
    %2 = vector.load %arg2[%c0_1, %c0_2] : memref<192x264xbf16, #tpu.memory_space<vmem>>, vector<192x264xbf16>
    %cst = arith.constant dense<0.000000e+00> : vector<2x264xf32>
    %3 = tpu.matmul %1, %2, %cst {dimension_numbers = #tpu.dot_dimension_numbers<[1], [0], [0], [1], [0, 0, 1, 1], [], []>} : vector<2x192xbf16>, vector<192x264xbf16>, vector<2x264xf32> -> vector<2x264xf32>
    %c0_3 = arith.constant 0 : index
    %c0_4 = arith.constant 0 : index
    %4 = vector.load %arg3[%c0_3, %c0_4] : memref<1x264xf32, #tpu.memory_space<vmem>>, vector<1x264xf32>
    %5 = vector.broadcast %4 : vector<1x264xf32> to vector<2x264xf32>
    %6 = arith.addf %3, %5 : vector<2x264xf32>
    %c0_5 = arith.constant 0 : index
    %c0_6 = arith.constant 0 : index
    %7 = vector.load %arg4[%c0_5, %c0_6] : memref<2x264xf32, #tpu.memory_space<vmem>>, vector<2x264xf32>
    tpu.vector_store %arg4[%c0_5, %c0_6], %6 {strides = array<i32>} : memref<2x264xf32, #tpu.memory_space<vmem>>, vector<2x264xf32>,
    return
  }
  func.func @transform_0(%arg0: i32) -> (i32, i32) {
    %c0_i32 = arith.constant 0 : i32
    %c0_i32_0 = arith.constant 0 : i32
    return %arg0, %c0_i32 : i32, i32
  }
  func.func @transform_1(%arg0: i32) -> (i32, i32) {
    %c0_i32 = arith.constant 0 : i32
    %c0_i32_0 = arith.constant 0 : i32
    %c0_i32_1 = arith.constant 0 : i32
    return %c0_i32, %c0_i32_0 : i32, i32
  }
  func.func @transform_2(%arg0: i32) -> (i32, i32) {
    %c0_i32 = arith.constant 0 : i32
    %c0_i32_0 = arith.constant 0 : i32
    %c0_i32_1 = arith.constant 0 : i32
    return %c0_i32, %c0_i32_0 : i32, i32
  }
  func.func @transform_3(%arg0: i32) -> (i32, i32) {
    %c0_i32 = arith.constant 0 : i32
    %c0_i32_0 = arith.constant 0 : i32
    return %arg0, %c0_i32 : i32, i32
  }
}

</mosaic_0001>

<llo_original>
// kernel: apply.1
$region0: #{apply.1}
  #allocation0 [shape = 'u32[]', space=smem, size = 0x4, offset = 0x4, fixed_abs, tag = 'smem constant byte address 0x4 - core index']
  #allocation1 [shape = 'u32[72,128]{1,0:T(1,128)}', space=vmem, size = 0x9000, scoped, tag = 'internal scratch']
  %s0 = inlined_call_operand.vmem [shape: f32[2,192], index: 0, kind: input, shape index: {}]
  %s1 = inlined_call_operand.hbm [shape: bf16[192,264], index: 1, kind: input, shape index: {}]
  %s2 = inlined_call_operand.vmem [shape: f32[1,264], index: 2, kind: input, shape index: {}]
  %s3 = inlined_call_operand.vmem [shape: f32[2,264], index: 3, kind: output, shape index: {}]
  %s4 = sld [smem:[#allocation0]]
  $region26: #{apply.1} parent=0
    _
  %s6 = ssub.s32 1, %s4
  %s7 = scalar_select 0, %s6, %s4
  $region1: #{apply.1} parent=0
    #allocation2 [shape = 'u8[147456]{0}', space=vmem, size = 0x24000, scoped, tag = 'input window, operand 1, single buffered']
    #allocation3 [shape = 's32[1]{0}', space=sflag, size = 0x4, scoped, tag = 'scoped memory for apply.1']
    %8 = vsyncpa [#allocation3], 0
    // Predicated region
    $region2: #{apply.1} parent=1 // pred_check
      _
    $region3: #{apply.1} parent=1 // pred_check_branch
      %10 = sbr.rel (0) target = $region5
    $region4: #{apply.1} parent=1 // pred_region
      _
    $region5: #{apply.1} parent=1 // pred_fallthru
      _
    // Predicated region
    $region6: #{apply.1} parent=1 // pred_check
      _
    $region7: #{apply.1} parent=1 // pred_check_branch
      %12 = sbr.rel (0) target = $region9
    $region8: #{apply.1} parent=1 // pred_region
      %14 = vsyncadd [#allocation3], 0
      %s15 = sshll.u32 %s1, 4
      %s16 = int_to_ptr.hbm [resolvable:$true] %s15
      %s17 = sshll.u32 [#allocation2], 4
      %s18 = int_to_ptr.vmem [resolvable:$true] %s17
      %23 = dma.hbm_to_vmem [thread:$0]  %s16, 4608, %s18, [#allocation3], 192, 192, 12
    $region9: #{apply.1} parent=1 // pred_fallthru
      _
    // Predicated region
    $region10: #{apply.1} parent=1 // pred_check
      _
    $region11: #{apply.1} parent=1 // pred_check_branch
      %25 = sbr.rel (0) target = $region13
    $region12: #{apply.1} parent=1 // pred_region
      _
    $region13: #{apply.1} parent=1 // pred_fallthru
      _
    // Predicated region
    $region14: #{apply.1} parent=1 // pred_check
      _
    $region15: #{apply.1} parent=1 // pred_check_branch
      %27 = sbr.rel (0) target = $region17
    $region16: #{apply.1} parent=1 // pred_region
      %29 = dma.done [#allocation3], 4608
    $region17: #{apply.1} parent=1 // pred_fallthru
      _
    %v31 = vld [vmem:[%s0] sm:$0xf]
    %33 = vst [vmem:[#allocation1] ss:$4 sm:$0xff] %v31
    %v34 = vld.sshfl [vmem:[#allocation1] sm:$0xff pattern:$0x73625140]
    %v35 = vld.sshfl [vmem:[#allocation1 + $0x8] sm:$0xff pattern:$0x73625140]
    %v38 = vpack.c.bf16 %v34, %v34
    %v39 = vpack.c.bf16 %v35, %v35
    %v40 = vld [vmem:[#allocation2] sm:$0xff]
    %v41 = vld [vmem:[#allocation2 + $0x8] sm:$0xf]
    %v42 = vld [vmem:[#allocation2 + $0xc] sm:$0xff]
    %v43 = vld [vmem:[#allocation2 + $0x14] sm:$0xf]
    %v44 = vld [vmem:[#allocation2 + $0x18] sm:$0xff]
    %v45 = vld [vmem:[#allocation2 + $0x20] sm:$0xf]
    %v46 = vld [vmem:[#allocation2 + $0x24] sm:$0xff]
    %v47 = vld [vmem:[#allocation2 + $0x2c] sm:$0xf]
    %v48 = vld [vmem:[#allocation2 + $0x30] sm:$0xff]
    %v49 = vld [vmem:[#allocation2 + $0x38] sm:$0xf]
    %v50 = vld [vmem:[#allocation2 + $0x3c] sm:$0xff]
    %v51 = vld [vmem:[#allocation2 + $0x44] sm:$0xf]
    %v52 = vld [vmem:[#allocation2 + $0x48] sm:$0xff]
    %v53 = vld [vmem:[#allocation2 + $0x50] sm:$0xf]
    %v54 = vld [vmem:[#allocation2 + $0x54] sm:$0xff]
    %v55 = vld [vmem:[#allocation2 + $0x5c] sm:$0xf]
    %v56 = vld [vmem:[#allocation2 + $0x60] sm:$0xff]
    %v57 = vld [vmem:[#allocation2 + $0x68] sm:$0xf]
    %v58 = vld [vmem:[#allocation2 + $0x6c] sm:$0xff]
    %v59 = vld [vmem:[#allocation2 + $0x74] sm:$0xf]
    %v60 = vld [vmem:[#allocation2 + $0x78] sm:$0xff]
    %v61 = vld [vmem:[#allocation2 + $0x80] sm:$0xf]
    %v62 = vld [vmem:[#allocation2 + $0x84] sm:$0xff]
    %v63 = vld [vmem:[#allocation2 + $0x8c] sm:$0xf]
    %v64 = vld [vmem:[#allocation2 + $0x90] sm:$0xff]
    %v65 = vld [vmem:[#allocation2 + $0x98] sm:$0xf]
    %v66 = vld [vmem:[#allocation2 + $0x9c] sm:$0xff]
    %v67 = vld [vmem:[#allocation2 + $0xa4] sm:$0xf]
    %v68 = vld [vmem:[#allocation2 + $0xa8] sm:$0xff]
    %v69 = vld [vmem:[#allocation2 + $0xb0] sm:$0xf]
    %v70 = vld [vmem:[#allocation2 + $0xb4] sm:$0xff]
    %v71 = vld [vmem:[#allocation2 + $0xbc] sm:$0xf]
    %v72 = vld [vmem:[#allocation2 + $0xc0] sm:$0xff]
    %v73 = vld [vmem:[#allocation2 + $0xc8] sm:$0xf]
    %v74 = vld [vmem:[#allocation2 + $0xcc] sm:$0xff]
    %v75 = vld [vmem:[#allocation2 + $0xd4] sm:$0xf]
    %v76 = vld [vmem:[#allocation2 + $0xd8] sm:$0xff]
    %v77 = vld [vmem:[#allocation2 + $0xe0] sm:$0xf]
    %v78 = vld [vmem:[#allocation2 + $0xe4] sm:$0xff]
    %v79 = vld [vmem:[#allocation2 + $0xec] sm:$0xf]
    %v80 = vld [vmem:[#allocation2 + $0xf0] sm:$0xff]
    %v81 = vld [vmem:[#allocation2 + $0xf8] sm:$0xf]
    %v82 = vld [vmem:[#allocation2 + $0xfc] sm:$0xff]
    %v83 = vld [vmem:[#allocation2 + $0x104] sm:$0xf]
    %v84 = vld [vmem:[#allocation2 + $0x108] sm:$0xff]
    %v85 = vld [vmem:[#allocation2 + $0x110] sm:$0xf]
    %v86 = vld [vmem:[#allocation2 + $0x114] sm:$0xff]
    %v87 = vld [vmem:[#allocation2 + $0x11c] sm:$0xf]
    %v88 = vld [vmem:[%s2] sm:$0x7]
    %v90 = vperm.slane %v88, 0
    %v91 = vperm.slane %v88, 1
    %v92 = vperm.slane %v88, 2
    %v144 = vunpack.c.l.b16 %v40
    %v145 = vunpack.c.h.b16 %v40
    %v146 = vunpack.c.l.b16 %v41
    %v147 = vunpack.c.l.b16 %v42
    %v148 = vunpack.c.h.b16 %v42
    %v149 = vunpack.c.l.b16 %v43
    %v150 = vunpack.c.l.b16 %v44
    %v151 = vunpack.c.h.b16 %v44
    %v152 = vunpack.c.l.b16 %v45
    %v153 = vunpack.c.l.b16 %v46
    %v154 = vunpack.c.h.b16 %v46
    %v155 = vunpack.c.l.b16 %v47
    %v156 = vunpack.c.l.b16 %v48
    %v157 = vunpack.c.h.b16 %v48
    %v158 = vunpack.c.l.b16 %v49
    %v159 = vunpack.c.l.b16 %v50
    %v160 = vunpack.c.h.b16 %v50
    %v161 = vunpack.c.l.b16 %v51
    %v162 = vunpack.c.l.b16 %v52
    %v163 = vunpack.c.h.b16 %v52
    %v164 = vunpack.c.l.b16 %v53
    %v165 = vunpack.c.l.b16 %v54
    %v166 = vunpack.c.h.b16 %v54
    %v167 = vunpack.c.l.b16 %v55
    %v168 = vunpack.c.l.b16 %v56
    %v169 = vunpack.c.h.b16 %v56
    %v170 = vunpack.c.l.b16 %v57
    %v171 = vunpack.c.l.b16 %v58
    %v172 = vunpack.c.h.b16 %v58
    %v173 = vunpack.c.l.b16 %v59
    %v174 = vunpack.c.l.b16 %v60
    %v175 = vunpack.c.h.b16 %v60
    %v176 = vunpack.c.l.b16 %v61
    %v177 = vunpack.c.l.b16 %v62
    %v178 = vunpack.c.h.b16 %v62
    %v179 = vunpack.c.l.b16 %v63
    %v180 = vunpack.c.l.b16 %v64
    %v181 = vunpack.c.h.b16 %v64
    %v182 = vunpack.c.l.b16 %v65
    %v183 = vunpack.c.l.b16 %v66
    %v184 = vunpack.c.h.b16 %v66
    %v185 = vunpack.c.l.b16 %v67
    %v186 = vunpack.c.l.b16 %v68
    %v187 = vunpack.c.h.b16 %v68
    %v188 = vunpack.c.l.b16 %v69
    %v189 = vunpack.c.l.b16 %v70
    %v190 = vunpack.c.h.b16 %v70
    %v191 = vunpack.c.l.b16 %v71
    %v192 = vunpack.c.l.b16 %v72
    %v193 = vunpack.c.h.b16 %v72
    %v194 = vunpack.c.l.b16 %v73
    %v195 = vunpack.c.l.b16 %v74
    %v196 = vunpack.c.h.b16 %v74
    %v197 = vunpack.c.l.b16 %v75
    %v198 = vunpack.c.l.b16 %v76
    %v199 = vunpack.c.h.b16 %v76
    %v200 = vunpack.c.l.b16 %v77
    %v201 = vunpack.c.l.b16 %v78
    %v202 = vunpack.c.h.b16 %v78
    %v203 = vunpack.c.l.b16 %v79
    %v204 = vunpack.c.l.b16 %v80
    %v205 = vunpack.c.h.b16 %v80
    %v206 = vunpack.c.l.b16 %v81
    %v207 = vunpack.c.l.b16 %v82
    %v208 = vunpack.c.h.b16 %v82
    %v209 = vunpack.c.l.b16 %v83
    %v210 = vunpack.c.l.b16 %v84
    %v211 = vunpack.c.h.b16 %v84
    %v212 = vunpack.c.l.b16 %v85
    %v213 = vunpack.c.l.b16 %v86
    %v214 = vunpack.c.h.b16 %v86
    %v215 = vunpack.c.l.b16 %v87
    %v216 = vpack.c.b16 %v147, %v144
    %v217 = vpack.c.b16 %v148, %v145
    %v218 = vpack.c.b16 %v149, %v146
    %v219 = vpack.c.b16 %v153, %v150
    %v220 = vpack.c.b16 %v154, %v151
    %v221 = vpack.c.b16 %v155, %v152
    %v222 = vpack.c.b16 %v159, %v156
    %v223 = vpack.c.b16 %v160, %v157
    %v224 = vpack.c.b16 %v161, %v158
    %v225 = vpack.c.b16 %v165, %v162
    %v226 = vpack.c.b16 %v166, %v163
    %v227 = vpack.c.b16 %v167, %v164
    %v228 = vpack.c.b16 %v171, %v168
    %v229 = vpack.c.b16 %v172, %v169
    %v230 = vpack.c.b16 %v173, %v170
    %v231 = vpack.c.b16 %v177, %v174
    %v232 = vpack.c.b16 %v178, %v175
    %v233 = vpack.c.b16 %v179, %v176
    %v234 = vpack.c.b16 %v183, %v180
    %v235 = vpack.c.b16 %v184, %v181
    %v236 = vpack.c.b16 %v185, %v182
    %v237 = vpack.c.b16 %v189, %v186
    %v238 = vpack.c.b16 %v190, %v187
    %v239 = vpack.c.b16 %v191, %v188
    %v240 = vpack.c.b16 %v195, %v192
    %v241 = vpack.c.b16 %v196, %v193
    %v242 = vpack.c.b16 %v197, %v194
    %v243 = vpack.c.b16 %v201, %v198
    %v244 = vpack.c.b16 %v202, %v199
    %v245 = vpack.c.b16 %v203, %v200
    %v246 = vpack.c.b16 %v207, %v204
    %v247 = vpack.c.b16 %v208, %v205
    %v248 = vpack.c.b16 %v209, %v206
    %v249 = vpack.c.b16 %v213, %v210
    %v250 = vpack.c.b16 %v214, %v211
    %v251 = vpack.c.b16 %v215, %v212
    %vm288 = vcmask 523264
    %v290 = vsel %vm288, %v39, 0
    %292 = vmatpush.bf16.msra.mxu0 %v237
    %293 = vmatpush.bf16.msra.mxu0 %v234
    %294 = vmatpush.bf16.msra.mxu0 %v231
    %295 = vmatpush.bf16.msra.mxu0 %v228
    %296 = vmatpush.bf16.msra.mxu0 %v225
    %297 = vmatpush.bf16.msra.mxu0 %v222
    %298 = vmatpush.bf16.msra.mxu0 %v219
    %299 = vmatpush.bf16.msra.mxu0 %v216
    %300 = vmatmul.bf16.gmra.mxu0 %v38
    %v301 = vpop.f32.mrf.mxu0
    %v302 = vadd.f32 %v90, %v301
    %v303 = vpop.f32.mrf.mxu0
    %304 = vdwg.mxu0
    %305 = vmatpush.bf16.msra.mxu0 0
    %306 = vmatpush.bf16.msra.mxu0 0
    %307 = vmatpush.bf16.msra.mxu0 0
    %308 = vmatpush.bf16.msra.mxu0 0
    %309 = vmatpush.bf16.msra.mxu0 %v249
    %310 = vmatpush.bf16.msra.mxu0 %v246
    %311 = vmatpush.bf16.msra.mxu0 %v243
    %312 = vmatpush.bf16.msra.mxu0 %v240
    %313 = vmatmul.bf16.gmra.mxu0 %v290
    %v314 = vpop.f32.mrf.mxu0
    %v315 = vadd.f32 %v302, %v314
    %v316 = vpop.f32.mrf.mxu0
    %317 = vdwg.mxu0
    %318 = vmatpush.bf16.msra.mxu0 %v238
    %319 = vmatpush.bf16.msra.mxu0 %v235
    %320 = vmatpush.bf16.msra.mxu0 %v232
    %321 = vmatpush.bf16.msra.mxu0 %v229
    %322 = vmatpush.bf16.msra.mxu0 %v226
    %323 = vmatpush.bf16.msra.mxu0 %v223
    %324 = vmatpush.bf16.msra.mxu0 %v220
    %325 = vmatpush.bf16.msra.mxu0 %v217
    %326 = vmatmul.bf16.gmra.mxu0 %v38
    %v327 = vpop.f32.mrf.mxu0
    %v328 = vadd.f32 %v91, %v327
    %v329 = vpop.f32.mrf.mxu0
    %330 = vdwg.mxu0
    %331 = vmatpush.bf16.msra.mxu0 0
    %332 = vmatpush.bf16.msra.mxu0 0
    %333 = vmatpush.bf16.msra.mxu0 0
    %334 = vmatpush.bf16.msra.mxu0 0
    %335 = vmatpush.bf16.msra.mxu0 %v250
    %336 = vmatpush.bf16.msra.mxu0 %v247
    %337 = vmatpush.bf16.msra.mxu0 %v244
    %338 = vmatpush.bf16.msra.mxu0 %v241
    %339 = vmatmul.bf16.gmra.mxu0 %v290
    %v340 = vpop.f32.mrf.mxu0
    %v341 = vadd.f32 %v328, %v340
    %v342 = vpop.f32.mrf.mxu0
    %343 = vdwg.mxu0
    %344 = vmatpush.bf16.msra.mxu0 %v239
    %345 = vmatpush.bf16.msra.mxu0 %v236
    %346 = vmatpush.bf16.msra.mxu0 %v233
    %347 = vmatpush.bf16.msra.mxu0 %v230
    %348 = vmatpush.bf16.msra.mxu0 %v227
    %349 = vmatpush.bf16.msra.mxu0 %v224
    %350 = vmatpush.bf16.msra.mxu0 %v221
    %351 = vmatpush.bf16.msra.mxu0 %v218
    %352 = vmatmul.bf16.gmra.mxu0 %v38
    %v353 = vpop.f32.mrf.mxu0
    %v354 = vadd.f32 %v92, %v353
    %v355 = vpop.f32.mrf.mxu0
    %356 = vdwg.mxu0
    %357 = vmatpush.bf16.msra.mxu0 0
    %358 = vmatpush.bf16.msra.mxu0 0
    %359 = vmatpush.bf16.msra.mxu0 0
    %360 = vmatpush.bf16.msra.mxu0 0
    %361 = vmatpush.bf16.msra.mxu0 %v251
    %362 = vmatpush.bf16.msra.mxu0 %v248
    %363 = vmatpush.bf16.msra.mxu0 %v245
    %364 = vmatpush.bf16.msra.mxu0 %v242
    %365 = vmatmul.bf16.gmra.mxu0 %v290
    %v366 = vpop.f32.mrf.mxu0
    %v367 = vadd.f32 %v354, %v366
    %v368 = vpop.f32.mrf.mxu0
    %369 = vdwg.mxu0
    %v373 = vrot.slane %v341, 6
    %v374 = vrot.slane %v367, 4
    %vm375 = vcmask 1041408
    %v376 = vsel %vm375, %v315, %v373
    %vm377 = vcmask 1043456
    %v378 = vsel %vm377, %v376, %v374
    %vm380 = vcmask 1043458
    %vm381 = vmor %vm380, %vm375
    %vm382 = vcmask 62468
    %vm383 = vmor %vm382, %vm381
    %384 = vst.msk [vmem:[%s3] sm:$0x3f] %vm383, %v378
    // Predicated region
    $region18: #{apply.1} parent=1 // pred_check
      _
    $region19: #{apply.1} parent=1 // pred_check_branch
      %386 = sbr.rel (0) target = $region21
    $region20: #{apply.1} parent=1 // pred_region
      _
    $region21: #{apply.1} parent=1 // pred_fallthru
      _
    // Predicated region
    $region22: #{apply.1} parent=1 // pred_check
      _
    $region23: #{apply.1} parent=1 // pred_check_branch
      %388 = sbr.rel (0) target = $region25
    $region24: #{apply.1} parent=1 // pred_region
      _
    $region25: #{apply.1} parent=1 // pred_fallthru
      _
    %389 = vsyncpa [#allocation3], 1

</llo_original>
